<compile_context>
chip_gen: v6e
topology: v6e:2x2x1
jax: 0.10.0
libtpu: 0.0.40
codegen_flags: <defaults>
</compile_context>

<pallas_src>
import functools

import jax
import jax.numpy as jnp
from jax.experimental import pallas as pl
from jax.experimental.pallas import tpu as pltpu


def _pick_c_block(c):
    """Channel block: multiple of 8 (sublane tile) if possible, else full C."""
    if c % 8 == 0 and c > 8:
        for cb in (128, 64, 32, 16, 8):
            if c % cb == 0:
                return cb
    return c


def _pick_hw_tile(hw):
    """Lane tile over H*W. Returns (tile, acc_width).

    Prefers the largest multiple-of-128 divisor of hw capped at 2048 (lane-dense,
    bounded unroll). If hw is not a multiple of 128 the full extent is used
    (BlockSpec requires last dim % 128 == 0 or full).
    """
    if hw % 128 != 0:
        # TODO(synk): odd spatial sizes fall back to a single full-extent tile.
        return hw, 1
    for t in range(min(hw, 2048), 127, -128):
        if hw % t == 0:
            return t, 128
    return hw, 128


def _abn_kernel(x_ref, w_ref, b_ref, o_ref,
                sum_ref, sq_ref, scale_ref, shift_ref,
                *, eps, slope, inv_count, acc_w):
    """Grid = (c_blocks, 2 passes, N, hw_tiles).

    x_ref/o_ref: [1, C_BLK, T_HW]   w_ref/b_ref: [C_BLK, 1]
    sum_ref/sq_ref: [C_BLK, acc_w]  scale_ref/shift_ref: [C_BLK, 1]
    """
    p = pl.program_id(1)   # 0 = statistics pass, 1 = normalize pass
    n = pl.program_id(2)
    h = pl.program_id(3)
    first_tile = jnp.logical_and(n == 0, h == 0)
    last_tile = jnp.logical_and(n == pl.num_programs(2) - 1,
                                h == pl.num_programs(3) - 1)

    @pl.when(p == 0)
    def _stats_pass():
        @pl.when(first_tile)
        def _():
            sum_ref[...] = jnp.zeros_like(sum_ref)
            sq_ref[...] = jnp.zeros_like(sq_ref)

        x = x_ref[0].astype(jnp.float32)            # [C_BLK, T_HW]
        t = x.shape[-1]
        if acc_w == 1:
            sum_ref[...] += jnp.sum(x, axis=-1, keepdims=True)
            sq_ref[...] += jnp.sum(x * x, axis=-1, keepdims=True)
        else:
            # Hierarchical reduction: VALU adds into a [C_BLK, 128] accumulator;
            # the cross-lane (XLU) sum happens only once, at finalize.
            s = sum_ref[...]
            q = sq_ref[...]
            for ci in range(t // acc_w):
                chunk = x[:, ci * acc_w:(ci + 1) * acc_w]
                s = s + chunk
                q = q + chunk * chunk
            sum_ref[...] = s
            sq_ref[...] = q

        @pl.when(last_tile)
        def _():
            total = jnp.sum(sum_ref[...], axis=-1, keepdims=True)     # [C_BLK,1]
            total_sq = jnp.sum(sq_ref[...], axis=-1, keepdims=True)   # [C_BLK,1]
            mean = total * inv_count
            # E[x^2] - mean^2 (f32 accumulation); clamp tiny negative cancellation.
            var = jnp.maximum(total_sq * inv_count - mean * mean, 0.0)
            inv_std = jax.lax.rsqrt(var + eps)
            scale = w_ref[...] * inv_std                              # gamma / std
            scale_ref[...] = scale
            shift_ref[...] = b_ref[...] - mean * scale                # beta - mean*scale

    @pl.when(p == 1)
    def _apply_pass():
        x = x_ref[0].astype(jnp.float32)
        y = x * scale_ref[...] + shift_ref[...]     # fused normalize + affine
        y = jnp.where(y >= 0, y, slope * y)         # leaky_relu
        o_ref[0] = y.astype(o_ref.dtype)


def inplace_abn_forward(x, weight, bias, *, eps=1e-5, slope=0.01):
    """x: [N, C, H, W]; weight/bias: [C]. Returns [N, C, H, W]."""
    N, C, H, W = x.shape
    HW = H * W

    c_blk = _pick_c_block(C)
    t_hw, acc_w = _pick_hw_tile(HW)
    n_c = C // c_blk
    n_hw = HW // t_hw

    x3 = x.reshape(N, C, HW)                            # free reshape, no transpose
    w2 = weight.astype(jnp.float32).reshape(C, 1)
    b2 = bias.astype(jnp.float32).reshape(C, 1)

    kernel = functools.partial(
        _abn_kernel,
        eps=float(eps),
        slope=float(slope),
        inv_count=1.0 / float(N * HW),
        acc_w=acc_w,
    )

    out3 = pl.pallas_call(
        kernel,
        out_shape=jax.ShapeDtypeStruct((N, C, HW), x.dtype),
        grid_spec=pltpu.PrefetchScalarGridSpec(
            num_scalar_prefetch=0,
            # (channel blocks, pass, batch, hw tiles); pass axis completes all
            # (n, h) tiles before the normalize pass starts.
            grid=(n_c, 2, N, n_hw),
            in_specs=[
                pl.BlockSpec((1, c_blk, t_hw), lambda c, p, n, h: (n, c, h)),
                pl.BlockSpec((c_blk, 1), lambda c, p, n, h: (c, 0)),
                pl.BlockSpec((c_blk, 1), lambda c, p, n, h: (c, 0)),
            ],
            # During pass 0 (p == 0) every step maps to block (0, c, 0) and is
            # never written by the kernel, so no HBM writeback happens until the
            # normalize pass overwrites that block with real data.
            out_specs=pl.BlockSpec((1, c_blk, t_hw),
                                   lambda c, p, n, h: (n * p, c, h * p)),
            scratch_shapes=[
                pltpu.VMEM((c_blk, acc_w), jnp.float32),   # partial sum
                pltpu.VMEM((c_blk, acc_w), jnp.float32),   # partial sum of squares
                pltpu.VMEM((c_blk, 1), jnp.float32),       # scale = gamma / std
                pltpu.VMEM((c_blk, 1), jnp.float32),       # shift = beta - mean*scale
            ],
        ),
        compiler_params=pltpu.CompilerParams(
            # Channel blocks are independent -> shard across TensorCores on v7x.
            dimension_semantics=("parallel", "arbitrary", "arbitrary", "arbitrary"),
            vmem_limit_bytes=32 * 1024 * 1024,
        ),
    )(x3, w2, b2)

    return out3.reshape(N, C, H, W)


def reference_inplace_abn(x, weight, bias, *, eps=1e-5, slope=0.01):
    """Pure-JAX reference (training-mode BN + leaky_relu), NCHW."""
    mean = jnp.mean(x, axis=(0, 2, 3), keepdims=True)
    var = jnp.mean((x - mean) ** 2, axis=(0, 2, 3), keepdims=True)
    y = (x - mean) * jax.lax.rsqrt(var + eps)
    y = y * weight.reshape(1, -1, 1, 1) + bias.reshape(1, -1, 1, 1)
    return jnp.where(y >= 0, y, slope * y)


if __name__ == "__main__":
    key = jax.random.PRNGKey(0)
    N, C, H, W = 2, 4, 16, 16

    x = jax.random.normal(key, (N, C, H, W), dtype=jnp.float32)

    # InPlaceABN.reset_parameters(): weight = ones, bias = zeros.
    weight = jnp.ones((C,), dtype=jnp.float32)
    bias = jnp.zeros((C,), dtype=jnp.float32)

    out = inplace_abn_forward(x, weight, bias, eps=1e-5, slope=0.01)
    out = jax.block_until_ready(out)

    ref = reference_inplace_abn(x, weight, bias, eps=1e-5, slope=0.01)
    assert out.shape == (N, C, H, W)
    assert jnp.allclose(out, ref, atol=1e-5, rtol=1e-5), "mismatch vs reference"

    print("KERNEL_OK")
</pallas_src>

<mosaic_0001>
module attributes {stable_mosaic.version = 11 : i64} {
  func.func @_abn_kernel(%arg0: i32, %arg1: i32, %arg2: i32, %arg3: i32, %arg4: memref<1x4x256xf32, #tpu.memory_space<vmem>>, %arg5: memref<4x1xf32, #tpu.memory_space<vmem>>, %arg6: memref<4x1xf32, #tpu.memory_space<vmem>>, %arg7: memref<1x4x256xf32, #tpu.memory_space<vmem>>, %arg8: memref<4x128xf32, #tpu.memory_space<vmem>>, %arg9: memref<4x128xf32, #tpu.memory_space<vmem>>, %arg10: memref<4x1xf32, #tpu.memory_space<vmem>>, %arg11: memref<4x1xf32, #tpu.memory_space<vmem>>) attributes {dimension_semantics = [#tpu.dimension_semantics<parallel>, #tpu.dimension_semantics<arbitrary>, #tpu.dimension_semantics<arbitrary>, #tpu.dimension_semantics<arbitrary>], iteration_bounds = array<i64: 1, 2, 2, 1>, scalar_prefetch = 0 : i64, scratch_operands = 4 : i64, tpu.core_type = #tpu.core_type<tc>, window_params = [{transform_indices = @transform_0, window_bounds = array<i64: 1, 4, 256>}, {transform_indices = @transform_1, window_bounds = array<i64: 4, 1>}, {transform_indices = @transform_2, window_bounds = array<i64: 4, 1>}, {transform_indices = @transform_3, window_bounds = array<i64: 1, 4, 256>}]} {
    %c0_i32 = arith.constant 0 : i32
    %0 = arith.cmpi eq, %arg2, %c0_i32 : i32
    %c0_i32_0 = arith.constant 0 : i32
    %1 = arith.cmpi eq, %arg3, %c0_i32_0 : i32
    %2 = arith.andi %0, %1 : i1
    %c1_i32 = arith.constant 1 : i32
    %3 = arith.cmpi eq, %arg2, %c1_i32 : i32
    %c0_i32_1 = arith.constant 0 : i32
    %4 = arith.cmpi eq, %arg3, %c0_i32_1 : i32
    %5 = arith.andi %3, %4 : i1
    %c0_i32_2 = arith.constant 0 : i32
    %6 = arith.cmpi eq, %arg1, %c0_i32_2 : i32
    %7 = arith.extui %6 : i1 to i32
    %c0_i32_3 = arith.constant 0 : i32
    %8 = arith.cmpi ne, %7, %c0_i32_3 : i32
    scf.if %8 {
      %12 = arith.extui %2 : i1 to i32
      %c0_i32_6 = arith.constant 0 : i32
      %13 = arith.cmpi ne, %12, %c0_i32_6 : i32
      scf.if %13 {
        %cst = arith.constant 0.000000e+00 : f32
        %30 = vector.broadcast %cst : f32 to vector<4x128xf32>
        %c0_18 = arith.constant 0 : index
        %c0_19 = arith.constant 0 : index
        %31 = vector.load %arg8[%c0_18, %c0_19] : memref<4x128xf32, #tpu.memory_space<vmem>>, vector<4x128xf32>
        tpu.vector_store %arg8[%c0_18, %c0_19], %30 {strides = array<i32>} : memref<4x128xf32, #tpu.memory_space<vmem>>, vector<4x128xf32>,
        %cst_20 = arith.constant 0.000000e+00 : f32
        %32 = vector.broadcast %cst_20 : f32 to vector<4x128xf32>
        %c0_21 = arith.constant 0 : index
        %c0_22 = arith.constant 0 : index
        %33 = vector.load %arg9[%c0_21, %c0_22] : memref<4x128xf32, #tpu.memory_space<vmem>>, vector<4x128xf32>
        tpu.vector_store %arg9[%c0_21, %c0_22], %32 {strides = array<i32>} : memref<4x128xf32, #tpu.memory_space<vmem>>, vector<4x128xf32>,
      } else {
      }
      %c0 = arith.constant 0 : index
      %c0_7 = arith.constant 0 : index
      %c0_8 = arith.constant 0 : index
      %14 = vector.load %arg4[%c0, %c0_7, %c0_8] : memref<1x4x256xf32, #tpu.memory_space<vmem>>, vector<1x4x256xf32>
      %15 = vector.shape_cast %14 : vector<1x4x256xf32> to vector<4x256xf32>
      %c0_9 = arith.constant 0 : index
      %c0_10 = arith.constant 0 : index
      %16 = vector.load %arg8[%c0_9, %c0_10] : memref<4x128xf32, #tpu.memory_space<vmem>>, vector<4x128xf32>
      %c0_11 = arith.constant 0 : index
      %c0_12 = arith.constant 0 : index
      %17 = vector.load %arg9[%c0_11, %c0_12] : memref<4x128xf32, #tpu.memory_space<vmem>>, vector<4x128xf32>
      %18 = vector.extract_strided_slice %15 {offsets = [0, 0], sizes = [4, 128], strides = [1, 1]} : vector<4x256xf32> to vector<4x128xf32>
      %19 = arith.addf %16, %18 : vector<4x128xf32>
      %20 = arith.mulf %18, %18 : vector<4x128xf32>
      %21 = arith.addf %17, %20 : vector<4x128xf32>
      %22 = vector.extract_strided_slice %15 {offsets = [0, 128], sizes = [4, 128], strides = [1, 1]} : vector<4x256xf32> to vector<4x128xf32>
      %23 = arith.addf %19, %22 : vector<4x128xf32>
      %24 = arith.mulf %22, %22 : vector<4x128xf32>
      %25 = arith.addf %21, %24 : vector<4x128xf32>
      %c0_13 = arith.constant 0 : index
      %c0_14 = arith.constant 0 : index
      %26 = vector.load %arg8[%c0_13, %c0_14] : memref<4x128xf32, #tpu.memory_space<vmem>>, vector<4x128xf32>
      tpu.vector_store %arg8[%c0_13, %c0_14], %23 {strides = array<i32>} : memref<4x128xf32, #tpu.memory_space<vmem>>, vector<4x128xf32>,
      %c0_15 = arith.constant 0 : index
      %c0_16 = arith.constant 0 : index
      %27 = vector.load %arg9[%c0_15, %c0_16] : memref<4x128xf32, #tpu.memory_space<vmem>>, vector<4x128xf32>
      tpu.vector_store %arg9[%c0_15, %c0_16], %25 {strides = array<i32>} : memref<4x128xf32, #tpu.memory_space<vmem>>, vector<4x128xf32>,
      %28 = arith.extui %5 : i1 to i32
      %c0_i32_17 = arith.constant 0 : i32
      %29 = arith.cmpi ne, %28, %c0_i32_17 : i32
      scf.if %29 {
        %c0_18 = arith.constant 0 : index
        %c0_19 = arith.constant 0 : index
        %30 = vector.load %arg8[%c0_18, %c0_19] : memref<4x128xf32, #tpu.memory_space<vmem>>, vector<4x128xf32>
        %cst = arith.constant dense<0.000000e+00> : vector<4xf32>
        %31 = vector.multi_reduction <add>, %30, %cst [1] : vector<4x128xf32> to vector<4xf32>
        %32 = vector.shape_cast %31 : vector<4xf32> to vector<4x1xf32>
        %c0_20 = arith.constant 0 : index
        %c0_21 = arith.constant 0 : index
        %33 = vector.load %arg9[%c0_20, %c0_21] : memref<4x128xf32, #tpu.memory_space<vmem>>, vector<4x128xf32>
        %cst_22 = arith.constant dense<0.000000e+00> : vector<4xf32>
        %34 = vector.multi_reduction <add>, %33, %cst_22 [1] : vector<4x128xf32> to vector<4xf32>
        %35 = vector.shape_cast %34 : vector<4xf32> to vector<4x1xf32>
        %cst_23 = arith.constant 0.001953125 : f32
        %36 = vector.broadcast %cst_23 : f32 to vector<4x1xf32>
        %37 = arith.mulf %32, %36 : vector<4x1xf32>
        %cst_24 = arith.constant 0.001953125 : f32
        %38 = vector.broadcast %cst_24 : f32 to vector<4x1xf32>
        %39 = arith.mulf %35, %38 : vector<4x1xf32>
        %40 = arith.mulf %37, %37 : vector<4x1xf32>
        %41 = arith.subf %39, %40 : vector<4x1xf32>
        %cst_25 = arith.constant 0.000000e+00 : f32
        %42 = vector.broadcast %cst_25 : f32 to vector<4x1xf32>
        %43 = arith.maximumf %41, %42 : vector<4x1xf32>
        %cst_26 = arith.constant 9.99999974E-6 : f32
        %44 = vector.broadcast %cst_26 : f32 to vector<4x1xf32>
        %45 = arith.addf %43, %44 : vector<4x1xf32>
        %46 = math.rsqrt %45 : vector<4x1xf32>
        %c0_27 = arith.constant 0 : index
        %c0_28 = arith.constant 0 : index
        %47 = vector.load %arg5[%c0_27, %c0_28] : memref<4x1xf32, #tpu.memory_space<vmem>>, vector<4x1xf32>
        %48 = arith.mulf %47, %46 : vector<4x1xf32>
        %c0_29 = arith.constant 0 : index
        %c0_30 = arith.constant 0 : index
        %49 = vector.load %arg10[%c0_29, %c0_30] : memref<4x1xf32, #tpu.memory_space<vmem>>, vector<4x1xf32>
        tpu.vector_store %arg10[%c0_29, %c0_30], %48 {strides = array<i32>} : memref<4x1xf32, #tpu.memory_space<vmem>>, vector<4x1xf32>,
        %c0_31 = arith.constant 0 : index
        %c0_32 = arith.constant 0 : index
        %50 = vector.load %arg6[%c0_31, %c0_32] : memref<4x1xf32, #tpu.memory_space<vmem>>, vector<4x1xf32>
        %51 = arith.mulf %37, %48 : vector<4x1xf32>
        %52 = arith.subf %50, %51 : vector<4x1xf32>
        %c0_33 = arith.constant 0 : index
        %c0_34 = arith.constant 0 : index
        %53 = vector.load %arg11[%c0_33, %c0_34] : memref<4x1xf32, #tpu.memory_space<vmem>>, vector<4x1xf32>
        tpu.vector_store %arg11[%c0_33, %c0_34], %52 {strides = array<i32>} : memref<4x1xf32, #tpu.memory_space<vmem>>, vector<4x1xf32>,
      } else {
      }
    } else {
    }
    %c1_i32_4 = arith.constant 1 : i32
    %9 = arith.cmpi eq, %arg1, %c1_i32_4 : i32
    %10 = arith.extui %9 : i1 to i32
    %c0_i32_5 = arith.constant 0 : i32
    %11 = arith.cmpi ne, %10, %c0_i32_5 : i32
    scf.if %11 {
      %c0 = arith.constant 0 : index
      %c0_6 = arith.constant 0 : index
      %c0_7 = arith.constant 0 : index
      %12 = vector.load %arg4[%c0, %c0_6, %c0_7] : memref<1x4x256xf32, #tpu.memory_space<vmem>>, vector<1x4x256xf32>
      %13 = vector.shape_cast %12 : vector<1x4x256xf32> to vector<4x256xf32>
      %c0_8 = arith.constant 0 : index
      %c0_9 = arith.constant 0 : index
      %14 = vector.load %arg10[%c0_8, %c0_9] : memref<4x1xf32, #tpu.memory_space<vmem>>, vector<4x1xf32>
      %15 = vector.broadcast %14 : vector<4x1xf32> to vector<4x256xf32>
      %16 = arith.mulf %13, %15 : vector<4x256xf32>
      %c0_10 = arith.constant 0 : index
      %c0_11 = arith.constant 0 : index
      %17 = vector.load %arg11[%c0_10, %c0_11] : memref<4x1xf32, #tpu.memory_space<vmem>>, vector<4x1xf32>
      %18 = vector.broadcast %17 : vector<4x1xf32> to vector<4x256xf32>
      %19 = arith.addf %16, %18 : vector<4x256xf32>
      %cst = arith.constant 0.000000e+00 : f32
      %20 = vector.broadcast %cst : f32 to vector<4x256xf32>
      %21 = arith.cmpf oge, %19, %20 : vector<4x256xf32>
      %cst_12 = arith.constant 0.00999999977 : f32
      %22 = vector.broadcast %cst_12 : f32 to vector<4x256xf32>
      %23 = arith.mulf %22, %19 : vector<4x256xf32>
      %24 = arith.select %21, %19, %23 : vector<4x256xi1>, vector<4x256xf32>
      %c0_13 = arith.constant 0 : index
      %c0_14 = arith.constant 0 : index
      %c0_15 = arith.constant 0 : index
      %25 = vector.load %arg7[%c0_13, %c0_14, %c0_15] : memref<1x4x256xf32, #tpu.memory_space<vmem>>, vector<1x4x256xf32>
      %26 = vector.shape_cast %25 : vector<1x4x256xf32> to vector<4x256xf32>
      %27 = vector.shape_cast %24 : vector<4x256xf32> to vector<1x4x256xf32>
      tpu.vector_store %arg7[%c0_13, %c0_14, %c0_15], %27 {strides = array<i32>} : memref<1x4x256xf32, #tpu.memory_space<vmem>>, vector<1x4x256xf32>,
    } else {
    }
    return
  }
  func.func @transform_0(%arg0: i32, %arg1: i32, %arg2: i32, %arg3: i32) -> (i32, i32, i32) {
    %c0_i32 = arith.constant 0 : i32
    return %arg2, %arg0, %arg3 : i32, i32, i32
  }
  func.func @transform_1(%arg0: i32, %arg1: i32, %arg2: i32, %arg3: i32) -> (i32, i32) {
    %c0_i32 = arith.constant 0 : i32
    %c0_i32_0 = arith.constant 0 : i32
    return %arg0, %c0_i32 : i32, i32
  }
  func.func @transform_2(%arg0: i32, %arg1: i32, %arg2: i32, %arg3: i32) -> (i32, i32) {
    %c0_i32 = arith.constant 0 : i32
    %c0_i32_0 = arith.constant 0 : i32
    return %arg0, %c0_i32 : i32, i32
  }
  func.func @transform_3(%arg0: i32, %arg1: i32, %arg2: i32, %arg3: i32) -> (i32, i32, i32) {
    %0 = arith.muli %arg2, %arg1 : i32
    %1 = arith.muli %arg3, %arg1 : i32
    %c0_i32 = arith.constant 0 : i32
    return %0, %arg0, %1 : i32, i32, i32
  }
}

</mosaic_0001>

<llo_original>
// kernel: tpu_custom_call.1
$region0: #{tpu_custom_call.1}
  #allocation0 [shape = 'u32[]', space=smem, size = 0x4, offset = 0x4, fixed_abs, tag = 'smem constant byte address 0x4 - core index']
  #allocation1 [shape = 'u32[144,128]{1,0:T(1,128)}', space=vmem, size = 0x12000, scoped, tag = 'internal scratch']
  #allocation2 [shape = 'f32[4,128]{1,0:T(4,128)}', space=vmem, size = 0x800, scoped, tag = 'scratch operand']
  #allocation3 [shape = 'f32[4,128]{1,0:T(4,128)}', space=vmem, size = 0x800, scoped, tag = 'scratch operand']
  #allocation4 [shape = 'f32[4,1]{1,0:T(4,128)}', space=vmem, size = 0x800, scoped, tag = 'scratch operand']
  #allocation5 [shape = 'f32[4,1]{1,0:T(4,128)}', space=vmem, size = 0x800, scoped, tag = 'scratch operand']
  %s0 = inlined_call_operand.hbm [shape: f32[2,4,256], index: 0, kind: input, shape index: {}]
  %s1 = inlined_call_operand.vmem [shape: f32[4,1], index: 1, kind: input, shape index: {}]
  %s2 = inlined_call_operand.vmem [shape: f32[4,1], index: 2, kind: input, shape index: {}]
  %s3 = inlined_call_operand.hbm [shape: f32[2,4,256], index: 3, kind: output, shape index: {}]
  %s4 = sld [smem:[#allocation0]]
  $region65: #{tpu_custom_call.1} parent=0
    _
  %s6 = ssub.s32 1, %s4
  %s7 = scalar_select 0, %s6, %s4
  $region1: #{tpu_custom_call.1} parent=0
    #allocation6 [shape = 'u8[8192]{0}', space=vmem, size = 0x2000, scoped, tag = 'input window, operand 0']
    #allocation7 [shape = 's32[2]{0}', space=sflag, size = 0x8, scoped, tag = 'scoped memory for tpu_custom_call.1']
    #allocation8 [shape = 's32[2]{0}', space=sflag, size = 0x8, scoped, tag = 'scoped memory for tpu_custom_call.1']
    #allocation9 [shape = 'u8[8192]{0}', space=vmem, size = 0x2000, scoped, tag = 'output window, operand 0']
    %8 = vsyncpa [#allocation7], 0
    %s9 = scalar_lea.sflag [#allocation7], 1
    %10 = vsyncpa %s9, 0
    %11 = vsyncpa [#allocation8], 0
    %s12 = scalar_lea.sflag [#allocation8], 1
    %13 = vsyncpa %s12, 0
    loop: start=0, step=1, limit=6
    $region2: #{tpu_custom_call.1} parent=1 // loop_pre_header
      _
    $region3: #{tpu_custom_call.1} parent=1 // loop_header
      %s15 = sphi 0, %s19
      %p16 = scmp.ge.s32.totalorder %s15, 6
      %s22 = sphi 0, %s48
      %s23 = sphi 0, %s44
      %s24 = sphi 0, %s40
      %s25 = sphi 0, %s36
      %s26 = sphi 0, %s22
      %s27 = sphi 0, %s23
      %s28 = sphi 0, %s24
      %s29 = sphi 0, %s25
      %s30 = sphi 0, %s26
      %s31 = sphi 0, %s27
      %s32 = sphi 0, %s28
      %s33 = sphi 0, %s29
      %s55 = sphi 0, %s57
      %s58 = sphi 0, %s55
      %s59 = sphi 0, %s58
      %s75 = sphi 0, %s59
      %s81 = sphi 0, %s83
      %s84 = sphi 0, %s81
      %s85 = sphi 0, %s84
      %s101 = sphi 0, %s85
      %s107 = sphi 0, %s109
      %s110 = sphi 0, %s107
      %s111 = sphi 0, %s110
      %s127 = sphi 0, %s111
      %s141 = sphi 0, %s143
      %s144 = sphi 0, %s141
      %s145 = sphi 0, %s144
      %s161 = sphi 0, %s145
    $region4: #{tpu_custom_call.1} parent=1 // loop_header_branch
      %18 = sbr.rel (%p16) target = $region8
    $region5: #{tpu_custom_call.1} parent=1 // loop_body
      %s20 = ssub.s32 %s15, 1
      %s21 = ssub.s32 %s15, 2
      %s34 = sadd.s32 1, %s25
      %p35 = scmp.ge.s32.totalorder %s34, 1
      %s36 = scalar_select %p35, 0, %s34
      %s37 = sadd.s32 1, %s24
      %s38 = scalar_select %p35, %s37, %s24
      %p39 = scmp.ge.s32.totalorder %s38, 2
      %s40 = scalar_select %p39, 0, %s38
      %s41 = sadd.s32 1, %s23
      %s42 = scalar_select %p39, %s41, %s23
      %p43 = scmp.ge.s32.totalorder %s42, 2
      %s44 = scalar_select %p43, 0, %s42
      %s45 = sadd.s32 1, %s22
      %s46 = scalar_select %p43, %s45, %s22
      %p47 = scmp.ge.s32.totalorder %s46, 1
      %s48 = scalar_select %p47, 0, %s46
      %s49 = ssub.s32 %s24, %s40
      %s50 = ssub.s32 %s22, %s48
      %s51 = sor.u32 %s49, %s50
      %s52 = ssub.s32 %s25, %s36
      %s53 = sor.u32 %s51, %s52
      %p54 = scmp.eq.s32.totalorder %s53, 0
      %s56 = sadd.s32 %s55, 1
      %s57 = scalar_select %p54, %s55, %s56
      %p60 = pneg %p54
      %p61 = scmp.eq.s32.totalorder %s15, 3
      %p62 = por %p60, %p61
      %p63 = scmp.ne.s32.totalorder %s55, %s58
      %p64 = scmp.eq.s32.totalorder %s15, 0
      %p65 = por %p63, %p64
      %p66 = scmp.ne.s32.totalorder %s55, %s58
      %p67 = scmp.eq.s32.totalorder %s20, 3
      %p68 = por %p66, %p67
      %p69 = scmp.ne.s32.totalorder %s58, %s59
      %p70 = scmp.eq.s32.totalorder %s20, 0
      %p71 = por %p69, %p70
      %p72 = scmp.ne.s32.totalorder %s58, %s59
      %p73 = scmp.eq.s32.totalorder %s21, 3
      %p74 = por %p72, %p73
      %p76 = scmp.ne.s32.totalorder %s59, %s75
      %p77 = scmp.eq.s32.totalorder %s21, 0
      %p78 = por %p76, %p77
      %s79 = ssub.s32 %s22, %s48
      %p80 = scmp.eq.s32.totalorder %s79, 0
      %s82 = sadd.s32 %s81, 1
      %s83 = scalar_select %p80, %s81, %s82
      %p86 = pneg %p80
      %p87 = scmp.eq.s32.totalorder %s15, 3
      %p88 = por %p86, %p87
      %p89 = scmp.ne.s32.totalorder %s81, %s84
      %p90 = scmp.eq.s32.totalorder %s15, 0
      %p91 = por %p89, %p90
      %p92 = scmp.ne.s32.totalorder %s81, %s84
      %p93 = scmp.eq.s32.totalorder %s20, 3
      %p94 = por %p92, %p93
      %p95 = scmp.ne.s32.totalorder %s84, %s85
      %p96 = scmp.eq.s32.totalorder %s20, 0
      %p97 = por %p95, %p96
      %p98 = scmp.ne.s32.totalorder %s84, %s85
      %p99 = scmp.eq.s32.totalorder %s21, 3
      %p100 = por %p98, %p99
      %p102 = scmp.ne.s32.totalorder %s85, %s101
      %p103 = scmp.eq.s32.totalorder %s21, 0
      %p104 = por %p102, %p103
      %s105 = ssub.s32 %s22, %s48
      %p106 = scmp.eq.s32.totalorder %s105, 0
      %s108 = sadd.s32 %s107, 1
      %s109 = scalar_select %p106, %s107, %s108
      %p112 = pneg %p106
      %p113 = scmp.eq.s32.totalorder %s15, 3
      %p114 = por %p112, %p113
      %p115 = scmp.ne.s32.totalorder %s107, %s110
      %p116 = scmp.eq.s32.totalorder %s15, 0
      %p117 = por %p115, %p116
      %p118 = scmp.ne.s32.totalorder %s107, %s110
      %p119 = scmp.eq.s32.totalorder %s20, 3
      %p120 = por %p118, %p119
      %p121 = scmp.ne.s32.totalorder %s110, %s111
      %p122 = scmp.eq.s32.totalorder %s20, 0
      %p123 = por %p121, %p122
      %p124 = scmp.ne.s32.totalorder %s110, %s111
      %p125 = scmp.eq.s32.totalorder %s21, 3
      %p126 = por %p124, %p125
      %p128 = scmp.ne.s32.totalorder %s111, %s127
      %p129 = scmp.eq.s32.totalorder %s21, 0
      %p130 = por %p128, %p129
      %s131 = smul.u32 %s24, %s23
      %s132 = smul.u32 %s25, %s23
      %s133 = smul.u32 %s40, %s44
      %s134 = smul.u32 %s36, %s44
      %s135 = ssub.s32 %s131, %s133
      %s136 = ssub.s32 %s22, %s48
      %s137 = sor.u32 %s135, %s136
      %s138 = ssub.s32 %s132, %s134
      %s139 = sor.u32 %s137, %s138
      %p140 = scmp.eq.s32.totalorder %s139, 0
      %s142 = sadd.s32 %s141, 1
      %s143 = scalar_select %p140, %s141, %s142
      %p146 = pneg %p140
      %p147 = scmp.eq.s32.totalorder %s15, 3
      %p148 = por %p146, %p147
      %p149 = scmp.ne.s32.totalorder %s141, %s144
      %p150 = scmp.eq.s32.totalorder %s15, 0
      %p151 = por %p149, %p150
      %p152 = scmp.ne.s32.totalorder %s141, %s144
      %p153 = scmp.eq.s32.totalorder %s20, 3
      %p154 = por %p152, %p153
      %p155 = scmp.ne.s32.totalorder %s144, %s145
      %p156 = scmp.eq.s32.totalorder %s20, 0
      %p157 = por %p155, %p156
      %p158 = scmp.ne.s32.totalorder %s144, %s145
      %p159 = scmp.eq.s32.totalorder %s21, 3
      %p160 = por %p158, %p159
      %p162 = scmp.ne.s32.totalorder %s145, %s161
      %p163 = scmp.eq.s32.totalorder %s21, 0
      %p164 = por %p162, %p163
      %p165 = scmp.le.s32.totalorder 1, %s15
      %p166 = scmp.lt.s32.totalorder %s15, 5
      %p167 = pnand %p165, %p166
      %p168 = pneg %p167
      // Predicated region
      $region9: #{tpu_custom_call.1} parent=5 // pred_check
        _
      $region10: #{tpu_custom_call.1} parent=5 // pred_check_branch
        %170 = sbr.rel (%p167) target = $region12
      $region11: #{tpu_custom_call.1} parent=5 // pred_region
        %s171 = ssub.s32 %s15, 1
        // Predicated region
        $region13: #{tpu_custom_call.1} parent=11 // pred_check
          %p172 = pneg %p97
        $region14: #{tpu_custom_call.1} parent=11 // pred_check_branch
          %174 = sbr.rel (%p172) target = $region16
        $region15: #{tpu_custom_call.1} parent=11 // pred_region
          %p175 = scmp.lt.s32.totalorder %s26, 0
          %s176 = scalar_select %p175, %s26, 0
          %s177 = smul.addr %s176, 4
          %s178 = scalar_lea.vmem %s1, %s177
        $region16: #{tpu_custom_call.1} parent=11 // pred_fallthru
          _
        // Predicated region
        $region17: #{tpu_custom_call.1} parent=11 // pred_check
          %p179 = pneg %p123
        $region18: #{tpu_custom_call.1} parent=11 // pred_check_branch
          %181 = sbr.rel (%p179) target = $region20
        $region19: #{tpu_custom_call.1} parent=11 // pred_region
          %p182 = scmp.lt.s32.totalorder %s26, 0
          %s183 = scalar_select %p182, %s26, 0
          %s184 = smul.addr %s183, 4
          %s185 = scalar_lea.vmem %s2, %s184
        $region20: #{tpu_custom_call.1} parent=11 // pred_fallthru
          _
      $region12: #{tpu_custom_call.1} parent=5 // pred_fallthru
        _
      %p186 = scmp.lt.s32.totalorder %s15, 4
      // Predicated region
      $region21: #{tpu_custom_call.1} parent=5 // pred_check
        %p187 = pneg %p186
      $region22: #{tpu_custom_call.1} parent=5 // pred_check_branch
        %189 = sbr.rel (%p187) target = $region24
      $region23: #{tpu_custom_call.1} parent=5 // pred_region
        // Predicated region
        $region25: #{tpu_custom_call.1} parent=23 // pred_check
          %p190 = pneg %p65
        $region26: #{tpu_custom_call.1} parent=23 // pred_check_branch
          %192 = sbr.rel (%p190) target = $region28
        $region27: #{tpu_custom_call.1} parent=23 // pred_region
          %s193 = sand.u32 %s55, 1
          %s194 = scalar_lea.sflag [#allocation7], %s193
          %s195 = sand.u32 %s55, 1
          %s196 = smul.addr %s195, 8
          %s197 = scalar_lea.vmem [#allocation6], %s196
          %s198 = smul.u32 2, %s25
          %s200 = ssub.s32 128, 128
          %201 = vsyncadd %s194, %s200
          %s202 = smul.addr %s22, 2
          %s203 = sadd.s32 %s198, %s202
          %s204 = smul.addr %s24, 2
          %s205 = sadd.s32 %s203, %s204
          %s206 = smul.addr %s205, 64
          %s207 = scalar_lea.hbm %s0, %s206
          %s209 = sshll.u32 %s197, 4
          %s210 = int_to_ptr.vmem [resolvable:$true] %s209
          %212 = dma.hbm_to_vmem [thread:$0]  %s207, 128, %s210, %s194
        $region28: #{tpu_custom_call.1} parent=23 // pred_fallthru
          _
      $region24: #{tpu_custom_call.1} parent=5 // pred_fallthru
        _
      %p213 = scmp.le.s32.totalorder 1, %s15
      %p214 = scmp.lt.s32.totalorder %s15, 5
      %p215 = pnand %p213, %p214
      %p216 = pneg %p215
      // Predicated region
      $region29: #{tpu_custom_call.1} parent=5 // pred_check
        _
      $region30: #{tpu_custom_call.1} parent=5 // pred_check_branch
        %218 = sbr.rel (%p215) target = $region32
      $region31: #{tpu_custom_call.1} parent=5 // pred_region
        %s219 = ssub.s32 %s15, 1
        %s220 = sand.u32 %s58, 1
        %s221 = scalar_lea.sflag [#allocation7], %s220
        %s222 = sand.u32 %s58, 1
        %s223 = smul.addr %s222, 8
        %s224 = scalar_lea.vmem [#allocation6], %s223
        // Predicated region
        $region33: #{tpu_custom_call.1} parent=31 // pred_check
          %p225 = pneg %p71
        $region34: #{tpu_custom_call.1} parent=31 // pred_check_branch
          %227 = sbr.rel (%p225) target = $region36
        $region35: #{tpu_custom_call.1} parent=31 // pred_region
          %228 = dma.done %s221, 128
        $region36: #{tpu_custom_call.1} parent=31 // pred_fallthru
          _
        %s229 = sand.u32 %s58, 1
        %s230 = scalar_lea.sflag [#allocation7], %s229
        %s231 = sand.u32 %s58, 1
        %s232 = smul.addr %s231, 8
        %s233 = scalar_lea.vmem [#allocation6], %s232
        %p234 = pneg %p71
        %p235 = pneg %p68
        %p236 = scmp.lt.s32.totalorder %s26, 0
        %s237 = scalar_select %p236, %s26, 0
        %s238 = smul.addr %s237, 4
        %s239 = scalar_lea.vmem %s1, %s238
        %p240 = pneg %p97
        %p241 = pneg %p94
        %p242 = scmp.lt.s32.totalorder %s26, 0
        %s243 = scalar_select %p242, %s26, 0
        %s244 = smul.addr %s243, 4
        %s245 = scalar_lea.vmem %s2, %s244
        %p246 = pneg %p123
        %p247 = pneg %p120
        %p248 = pneg %p157
        %p249 = pneg %p154
        %s250 = sand.u32 %s144, 1
        %s251 = scalar_lea.sflag [#allocation8], %s250
        %s252 = sand.u32 %s144, 1
        %s253 = smul.addr %s252, 8
        %s254 = scalar_lea.vmem [#allocation9], %s253
        %s255 = smul.u32 2, %s29
        %p256 = scmp.lt.s32.totalorder %s26, 0
        %s257 = scalar_select %p256, %s26, 0
        %s258 = smul.addr %s257, 4
        %s259 = scalar_lea.vmem %s1, %s258
        %p260 = scmp.lt.s32.totalorder %s26, 0
        %s261 = scalar_select %p260, %s26, 0
        %s262 = smul.addr %s261, 4
        %s263 = scalar_lea.vmem %s2, %s262
        %s264 = smul.u32 %s28, %s27
        %s265 = smul.u32 %s29, %s27
        %s266 = smul.u32 2, %s265
        %p267 = scmp.eq.s32.totalorder %s28, 0
        %p268 = scmp.eq.s32.totalorder %s29, 0
        %p269 = pnand %p267, %p268
        %p270 = pneg %p269
        %p271 = scmp.eq.s32.totalorder %s28, 1
        %p272 = pnand %p271, %p268
        %p273 = pneg %p272
        %p274 = scmp.eq.s32.totalorder %s27, 0
        // Predicated region
        $region37: #{tpu_custom_call.1} parent=31 // pred_check
          %p275 = pneg %p274
        $region38: #{tpu_custom_call.1} parent=31 // pred_check_branch
          %277 = sbr.rel (%p275) target = $region40
        $region39: #{tpu_custom_call.1} parent=31 // pred_region
          // Predicated region
          $region41: #{tpu_custom_call.1} parent=39 // pred_check
            _
          $region42: #{tpu_custom_call.1} parent=39 // pred_check_branch
            %279 = sbr.rel (%p269) target = $region44
          $region43: #{tpu_custom_call.1} parent=39 // pred_region
            %280 = vst [vmem:[#allocation2] sm:$0xf] 0.0
            %281 = vst [vmem:[#allocation3] sm:$0xf] 0.0
          $region44: #{tpu_custom_call.1} parent=39 // pred_fallthru
            _
          %v282 = vld [vmem:[%s224] sm:$0xff]
          %v283 = vld [vmem:[#allocation2] sm:$0xf]
          %v284 = vld [vmem:[#allocation3] sm:$0xf]
          %v285 = vadd.f32 %v283, %v282
          %v286 = vmul.f32 %v282, %v282
          %v287 = vadd.f32 %v284, %v286
          %v289 = vcombine.high %v282, %v282
          %v291 = vadd.f32 %v285, %v289
          %v292 = vrot.slane %v282, 4
          %v294 = vmul.f32 %v292, %v292
          %v295 = vadd.f32 %v287, %v294
          %296 = vst [vmem:[#allocation2] sm:$0xf] %v291
          %297 = vst [vmem:[#allocation3] sm:$0xf] %v295
          // Predicated region
          $region45: #{tpu_custom_call.1} parent=39 // pred_check
            _
          $region46: #{tpu_custom_call.1} parent=39 // pred_check_branch
            %299 = sbr.rel (%p272) target = $region48
          $region47: #{tpu_custom_call.1} parent=39 // pred_region
            %v300 = vld [vmem:[#allocation2] sm:$0xf]
            %vm301 = vcmask 1043456
            %v302 = vsel %vm301, %v300, 0.0
            %303 = vadd.xlane.f32.xlu0 %v302
            %v304 = vpop.xlane.xlu0 %303
            %v305 = vld [vmem:[#allocation3] sm:$0xf]
            %v306 = vsel %vm301, %v305, 0.0
            %307 = vadd.xlane.f32.xlu0 %v306
            %v308 = vpop.xlane.xlu0 %307
            %v309 = vmul.f32 %v304, 0.001953125
            %v310 = vmul.f32 %v308, 0.001953125
            %v311 = vmul.f32 %v309, %v309
            %v312 = vsub.f32 %v310, %v311
            %v313 = vmax.f32 %v312, 0.0
            %v314 = vadd.f32 %v313, 1e-05
            %v315 = vrsqrt.pop %v314
            %v316 = vld [vmem:[%s259] sm:$0xf]
            %v317 = vmul.f32 %v316, %v315
            %vm318 = vcmask 3072
            %319 = vst.msk [vmem:[#allocation4] sm:$0xf] %vm318, %v317
            %v320 = vld [vmem:[%s263] sm:$0xf]
            %v321 = vmul.f32 %v309, %v317
            %v322 = vsub.f32 %v320, %v321
            %323 = vst.msk [vmem:[#allocation5] sm:$0xf] %vm318, %v322
          $region48: #{tpu_custom_call.1} parent=39 // pred_fallthru
            _
        $region40: #{tpu_custom_call.1} parent=31 // pred_fallthru
          _
        %p324 = scmp.eq.s32.totalorder %s27, 1
        // Predicated region
        $region49: #{tpu_custom_call.1} parent=31 // pred_check
          %p325 = pneg %p324
        $region50: #{tpu_custom_call.1} parent=31 // pred_check_branch
          %327 = sbr.rel (%p325) target = $region52
        $region51: #{tpu_custom_call.1} parent=31 // pred_region
          %v328 = vld [vmem:[%s224] sm:$0xff]
          %v329 = vld [vmem:[#allocation4] sm:$0xf]
          %331 = vset.pattern.permute.xlu0 0
          %332 = vperm.xlu0 %331, %v329
          %v333 = vpop.permute.xlu0 %332
          %v335 = vunpack.c.l.s4 839922192
          %v336 = vunpack.c.0.s8 %v335
          %v337 = vlaneseq
          %v338 = vshrl.u32 %v337, 7
          %v339 = vsub.s32 %v336, %v338
          %v340 = vrot.slane %v333, %v339
          %v342 = vmul.f32 %v328, %v340
          %v343 = vld [vmem:[#allocation5] sm:$0xf]
          %345 = vset.pattern.permute.xlu0 0
          %346 = vperm.xlu0 %345, %v343
          %v347 = vpop.permute.xlu0 %346
          %v349 = vunpack.c.l.s4 839922192
          %v350 = vunpack.c.0.s8 %v349
          %v351 = vlaneseq
          %v352 = vshrl.u32 %v351, 7
          %v353 = vsub.s32 %v350, %v352
          %v354 = vrot.slane %v347, %v353
          %v356 = vadd.f32 %v342, %v354
          %vm357 = vcmp.ge.f32.partialorder %v356, 0.0
          %v358 = vmul.f32 %v356, 0.01
          %v359 = vsel %vm357, %v356, %v358
          %360 = vst [vmem:[%s254] sm:$0xff] %v359
        $region52: #{tpu_custom_call.1} parent=31 // pred_fallthru
          _
        %s361 = sand.u32 %s144, 1
        %s362 = scalar_lea.sflag [#allocation8], %s361
        %s363 = sand.u32 %s144, 1
        %s364 = smul.addr %s363, 8
        %s365 = scalar_lea.vmem [#allocation9], %s364
        // Predicated region
        $region53: #{tpu_custom_call.1} parent=31 // pred_check
          %p366 = pneg %p154
        $region54: #{tpu_custom_call.1} parent=31 // pred_check_branch
          %368 = sbr.rel (%p366) target = $region56
        $region55: #{tpu_custom_call.1} parent=31 // pred_region
          %s369 = smul.u32 %s28, %s27
          %s370 = smul.u32 %s29, %s27
          %s371 = smul.u32 2, %s370
          %s373 = ssub.s32 128, 128
          %374 = vsyncadd %s362, %s373
          %s375 = smul.addr %s26, 2
          %s376 = sadd.s32 %s371, %s375
          %s377 = smul.addr %s369, 2
          %s378 = sadd.s32 %s376, %s377
          %s379 = smul.addr %s378, 64
          %s380 = scalar_lea.hbm %s3, %s379
          %s382 = sshll.u32 %s365, 4
          %s383 = int_to_ptr.vmem [resolvable:$true] %s382
          %385 = dma.vmem_to_hbm [thread:$0]  %s383, 128, %s380, %s362
        $region56: #{tpu_custom_call.1} parent=31 // pred_fallthru
          _
      $region32: #{tpu_custom_call.1} parent=5 // pred_fallthru
        _
      %p386 = scmp.le.s32.totalorder 2, %s15
      // Predicated region
      $region57: #{tpu_custom_call.1} parent=5 // pred_check
        %p387 = pneg %p386
      $region58: #{tpu_custom_call.1} parent=5 // pred_check_branch
        %389 = sbr.rel (%p387) target = $region60
      $region59: #{tpu_custom_call.1} parent=5 // pred_region
        %s390 = ssub.s32 %s15, 2
        // Predicated region
        $region61: #{tpu_custom_call.1} parent=59 // pred_check
          %p391 = pneg %p160
        $region62: #{tpu_custom_call.1} parent=59 // pred_check_branch
          %393 = sbr.rel (%p391) target = $region64
        $region63: #{tpu_custom_call.1} parent=59 // pred_region
          %s394 = sand.u32 %s145, 1
          %s395 = scalar_lea.sflag [#allocation8], %s394
          %s396 = sand.u32 %s145, 1
          %s397 = smul.addr %s396, 8
          %s398 = scalar_lea.vmem [#allocation9], %s397
          %399 = dma.done %s395, 128
        $region64: #{tpu_custom_call.1} parent=59 // pred_fallthru
          _
      $region60: #{tpu_custom_call.1} parent=5 // pred_fallthru
        _
    $region6: #{tpu_custom_call.1} parent=1 // loop_footer
      %s19 = sadd.s32 1, %s15
    $region7: #{tpu_custom_call.1} parent=1 // loop_footer_branch
      %14 = sbr.rel target = $region3
    $region8: #{tpu_custom_call.1} parent=1 // loop_exit
      _
    %400 = vsyncpa [#allocation7], 1
    %s401 = scalar_lea.sflag [#allocation7], 1
    %402 = vsyncpa %s401, 1
    %403 = vsyncpa [#allocation8], 1
    %s404 = scalar_lea.sflag [#allocation8], 1
    %405 = vsyncpa %s404, 1

</llo_original>
